<compile_context>
chip_gen: v7x
topology: tpu7x:2x2x1
jax: 0.10.0
libtpu: 0.0.40
codegen_flags: <defaults>
</compile_context>

<pallas_src>
import jax
import jax.numpy as jnp
from jax.experimental import pallas as pl
from jax.experimental.pallas import tpu as pltpu


def _round_up(n, m):
    return ((n + m - 1) // m) * m


def _critic_kernel(x_ref, a_ref, w1x_ref, w1a_ref, b1_ref,
                   w2_ref, b2_ref, w3_ref, b3_ref, out_ref):
    """One batch tile of the critic MLP.

    x_ref  : (TB, S)    f32/bf16  batch tile of states
    a_ref  : (TB, A)    f32/bf16  batch tile of actions
    w1x_ref: (S, H1)    bf16      (resident across the whole grid)
    w1a_ref: (A, H1)    bf16
    b1_ref : (1, H1)    f32
    w2_ref : (H1, H2)   bf16
    b2_ref : (1, H2)    f32
    w3_ref : (1, H2)    bf16      row form of the (H2, 1) output weight
    b3_ref : (1, 1)     f32
    out_ref: (TB, 1)    f32       packed q for this batch tile
    """
    wdt = w1x_ref.dtype

    xv = x_ref[...]
    av = a_ref[...]
    if xv.dtype != wdt:          # trace-time branch; no-op if inputs are bf16
        xv = xv.astype(wdt)
    if av.dtype != wdt:
        av = av.astype(wdt)

    # Layer 1 (concat-free): h1 = relu(x @ W1_x + a @ W1_a + b1)
    h1 = jnp.dot(xv, w1x_ref[...], preferred_element_type=jnp.float32)
    h1 = h1 + jnp.dot(av, w1a_ref[...], preferred_element_type=jnp.float32)
    h1 = jnp.maximum(h1 + b1_ref[...], 0.0)            # f32 bias/ReLU (VPU)

    # Layer 2: h2 = relu(h1 @ W2 + b2)
    h2 = jnp.dot(h1.astype(wdt), w2_ref[...],
                 preferred_element_type=jnp.float32)
    h2 = jnp.maximum(h2 + b2_ref[...], 0.0)

    # Layer 3: single output column -> VPU multiply + lane reduce (MXU stays free)
    q = jnp.sum(h2 * w3_ref[...].astype(jnp.float32), axis=-1, keepdims=True)
    out_ref[...] = (q + b3_ref[...]).astype(out_ref.dtype)       # (TB, 1)


def critic_forward(x, a, params, *, block_batch=1024):
    """x: (B, state_dim), a: (B, action_dim)  ->  (B, 1) f32."""
    w1, b1, w2, b2, w3, b3 = params
    B, S = x.shape
    A = a.shape[1]
    H1 = w1.shape[1]
    H2 = w2.shape[1]

    # Split W1 so the kernel never needs a concatenated [x, a] input.
    w1x = w1[:S]
    w1a = w1[S:]
    w3_row = w3.reshape(1, H2)                       # (H2, 1) -> (1, H2)
    b1 = b1.reshape(1, H1).astype(jnp.float32)
    b2 = b2.reshape(1, H2).astype(jnp.float32)
    b3 = b3.reshape(1, 1).astype(jnp.float32)

    # Batch tile: multiple of 8 (sublane granularity). The tail grid block may
    # be partial -- no wrapper-side padding pass over x / a.
    tb = max(8, min(_round_up(block_batch, 8), _round_up(B, 8)))
    grid = (pl.cdiv(B, tb),)

    def act_spec(feat):
        return pl.BlockSpec((tb, feat), lambda i: (i, 0))

    def res_spec(arr):  # full-array block, constant index -> resident in VMEM
        return pl.BlockSpec(arr.shape, lambda i: (0, 0))

    out = pl.pallas_call(
        _critic_kernel,
        out_shape=jax.ShapeDtypeStruct((B, 1), jnp.float32),
        grid=grid,
        in_specs=[act_spec(S), act_spec(A),
                  res_spec(w1x), res_spec(w1a), res_spec(b1),
                  res_spec(w2), res_spec(b2),
                  res_spec(w3_row), res_spec(b3)],
        out_specs=pl.BlockSpec((tb, 1), lambda i: (i, 0)),
        compiler_params=pltpu.CompilerParams(
            dimension_semantics=("parallel",)),   # megacore sharding on v7x
    )(x, a, w1x, w1a, b1, w2, b2, w3_row, b3)

    return out                                        # already (B, 1), no slice


def init_critic_params(key, state_dim, action_dim, h1, h2,
                       weight_dtype=jnp.bfloat16):
    """PyTorch nn.Linear default init (U(-k, k), k = 1/sqrt(fan_in)).
    Weights stored as (in_features, out_features); layer-1 weight keeps the
    fused (state_dim + action_dim, h1) shape, matching the PyTorch module.
    Weights in bf16 (halves weight traffic, native MXU input on v6e/v7x);
    biases in f32."""
    dims = [(state_dim + action_dim, h1), (h1, h2), (h2, 1)]
    params = []
    for fan_in, fan_out in dims:
        key, kw, kb = jax.random.split(key, 3)
        bound = 1.0 / (fan_in ** 0.5)
        w = jax.random.uniform(kw, (fan_in, fan_out), jnp.float32, -bound, bound)
        b = jax.random.uniform(kb, (1, fan_out), jnp.float32, -bound, bound)
        params += [w.astype(weight_dtype), b]
    return tuple(params)


def critic_reference(x, a, params):
    """Pure-JAX reference with the same precision choices as the kernel."""
    w1, b1, w2, b2, w3, b3 = params
    wdt = w1.dtype
    xa = jnp.concatenate([x, a], axis=1)
    h1 = jnp.maximum(
        jnp.dot(xa.astype(wdt), w1, preferred_element_type=jnp.float32) + b1, 0.0)
    h2 = jnp.maximum(
        jnp.dot(h1.astype(wdt), w2, preferred_element_type=jnp.float32) + b2, 0.0)
    q = jnp.sum(h2 * w3.reshape(1, -1).astype(jnp.float32),
                axis=-1, keepdims=True) + b3
    return q


if __name__ == "__main__":
    key = jax.random.PRNGKey(0)
    state_dim, action_dim = 16, 8
    # NOTE: hidden dims that are multiples of 128 would fill the 128-lane vregs
    # and the MXU far better; 32 is kept to mirror a typical DDPG critic.
    hidden_1, hidden_2 = 32, 32

    kx, ka, kp = jax.random.split(key, 3)
    params = init_critic_params(kp, state_dim, action_dim, hidden_1, hidden_2)

    fwd = jax.jit(critic_forward, static_argnames=("block_batch",))

    # Case 1: small aligned batch, single grid step.
    batch = 8
    x = jax.random.normal(kx, (batch, state_dim), jnp.float32)
    a = jax.random.normal(ka, (batch, action_dim), jnp.float32)
    out = jax.block_until_ready(fwd(x, a, params))
    ref = critic_reference(x, a, params)
    assert out.shape == (batch, 1), out.shape
    err = jnp.max(jnp.abs(out - ref))
    assert jnp.allclose(out, ref, atol=2e-3, rtol=2e-3), f"max abs err = {err}"

    # Case 2: non-divisible batch, several grid steps + partial tail block
    # (exercises the pad-free path introduced by the review).
    batch2 = 37
    x2 = jax.random.normal(kx, (batch2, state_dim), jnp.float32)
    a2 = jax.random.normal(ka, (batch2, action_dim), jnp.float32)
    out2 = jax.block_until_ready(fwd(x2, a2, params, block_batch=16))
    ref2 = critic_reference(x2, a2, params)
    assert out2.shape == (batch2, 1), out2.shape
    err2 = jnp.max(jnp.abs(out2 - ref2))
    assert jnp.allclose(out2, ref2, atol=2e-3, rtol=2e-3), f"max abs err = {err2}"

    print("KERNEL_OK")
</pallas_src>

<mosaic_0001>
module attributes {stable_mosaic.version = 11 : i64} {
  func.func @_critic_kernel(%arg0: i32, %arg1: memref<8x16xf32, #tpu.memory_space<vmem>>, %arg2: memref<8x8xf32, #tpu.memory_space<vmem>>, %arg3: memref<16x32xbf16, #tpu.memory_space<vmem>>, %arg4: memref<8x32xbf16, #tpu.memory_space<vmem>>, %arg5: memref<1x32xf32, #tpu.memory_space<vmem>>, %arg6: memref<32x32xbf16, #tpu.memory_space<vmem>>, %arg7: memref<1x32xf32, #tpu.memory_space<vmem>>, %arg8: memref<1x32xbf16, #tpu.memory_space<vmem>>, %arg9: memref<1x1xf32, #tpu.memory_space<vmem>>, %arg10: memref<8x1xf32, #tpu.memory_space<vmem>>) attributes {dimension_semantics = [#tpu.dimension_semantics<parallel>], iteration_bounds = array<i64: 1>, scalar_prefetch = 0 : i64, scratch_operands = 0 : i64, tpu.core_type = #tpu.core_type<tc>, window_params = [{transform_indices = @transform_0, window_bounds = array<i64: 8, 16>}, {transform_indices = @transform_1, window_bounds = array<i64: 8, 8>}, {pipeline_mode = #tpu.pipeline_mode<synchronous>, transform_indices = @transform_2, window_bounds = array<i64: 16, 32>}, {pipeline_mode = #tpu.pipeline_mode<synchronous>, transform_indices = @transform_3, window_bounds = array<i64: 8, 32>}, {pipeline_mode = #tpu.pipeline_mode<synchronous>, transform_indices = @transform_4, window_bounds = array<i64: 1, 32>}, {pipeline_mode = #tpu.pipeline_mode<synchronous>, transform_indices = @transform_5, window_bounds = array<i64: 32, 32>}, {pipeline_mode = #tpu.pipeline_mode<synchronous>, transform_indices = @transform_6, window_bounds = array<i64: 1, 32>}, {pipeline_mode = #tpu.pipeline_mode<synchronous>, transform_indices = @transform_7, window_bounds = array<i64: 1, 32>}, {pipeline_mode = #tpu.pipeline_mode<synchronous>, transform_indices = @transform_8, window_bounds = array<i64: 1, 1>}, {transform_indices = @transform_9, window_bounds = array<i64: 8, 1>}]} {
    %c0 = arith.constant 0 : index
    %c0_0 = arith.constant 0 : index
    %0 = vector.load %arg1[%c0, %c0_0] : memref<8x16xf32, #tpu.memory_space<vmem>>, vector<8x16xf32>
    %c0_1 = arith.constant 0 : index
    %c0_2 = arith.constant 0 : index
    %1 = vector.load %arg2[%c0_1, %c0_2] : memref<8x8xf32, #tpu.memory_space<vmem>>, vector<8x8xf32>
    %2 = arith.truncf %0 : vector<8x16xf32> to vector<8x16xbf16>
    %3 = arith.truncf %1 : vector<8x8xf32> to vector<8x8xbf16>
    %c0_3 = arith.constant 0 : index
    %c0_4 = arith.constant 0 : index
    %4 = vector.load %arg3[%c0_3, %c0_4] : memref<16x32xbf16, #tpu.memory_space<vmem>>, vector<16x32xbf16>
    %cst = arith.constant dense<0.000000e+00> : vector<8x32xf32>
    %5 = tpu.matmul %2, %4, %cst {dimension_numbers = #tpu.dot_dimension_numbers<[1], [0], [0], [1], [0, 0, 1, 1], [], []>} : vector<8x16xbf16>, vector<16x32xbf16>, vector<8x32xf32> -> vector<8x32xf32>
    %c0_5 = arith.constant 0 : index
    %c0_6 = arith.constant 0 : index
    %6 = vector.load %arg4[%c0_5, %c0_6] : memref<8x32xbf16, #tpu.memory_space<vmem>>, vector<8x32xbf16>
    %cst_7 = arith.constant dense<0.000000e+00> : vector<8x32xf32>
    %7 = tpu.matmul %3, %6, %cst_7 {dimension_numbers = #tpu.dot_dimension_numbers<[1], [0], [0], [1], [0, 0, 1, 1], [], []>} : vector<8x8xbf16>, vector<8x32xbf16>, vector<8x32xf32> -> vector<8x32xf32>
    %8 = arith.addf %5, %7 : vector<8x32xf32>
    %c0_8 = arith.constant 0 : index
    %c0_9 = arith.constant 0 : index
    %9 = vector.load %arg5[%c0_8, %c0_9] : memref<1x32xf32, #tpu.memory_space<vmem>>, vector<1x32xf32>
    %10 = vector.broadcast %9 : vector<1x32xf32> to vector<8x32xf32>
    %11 = arith.addf %8, %10 : vector<8x32xf32>
    %cst_10 = arith.constant 0.000000e+00 : f32
    %12 = vector.broadcast %cst_10 : f32 to vector<8x32xf32>
    %13 = arith.maximumf %11, %12 : vector<8x32xf32>
    %14 = arith.truncf %13 : vector<8x32xf32> to vector<8x32xbf16>
    %c0_11 = arith.constant 0 : index
    %c0_12 = arith.constant 0 : index
    %15 = vector.load %arg6[%c0_11, %c0_12] : memref<32x32xbf16, #tpu.memory_space<vmem>>, vector<32x32xbf16>
    %cst_13 = arith.constant dense<0.000000e+00> : vector<8x32xf32>
    %16 = tpu.matmul %14, %15, %cst_13 {dimension_numbers = #tpu.dot_dimension_numbers<[1], [0], [0], [1], [0, 0, 1, 1], [], []>} : vector<8x32xbf16>, vector<32x32xbf16>, vector<8x32xf32> -> vector<8x32xf32>
    %c0_14 = arith.constant 0 : index
    %c0_15 = arith.constant 0 : index
    %17 = vector.load %arg7[%c0_14, %c0_15] : memref<1x32xf32, #tpu.memory_space<vmem>>, vector<1x32xf32>
    %18 = vector.broadcast %17 : vector<1x32xf32> to vector<8x32xf32>
    %19 = arith.addf %16, %18 : vector<8x32xf32>
    %cst_16 = arith.constant 0.000000e+00 : f32
    %20 = vector.broadcast %cst_16 : f32 to vector<8x32xf32>
    %21 = arith.maximumf %19, %20 : vector<8x32xf32>
    %c0_17 = arith.constant 0 : index
    %c0_18 = arith.constant 0 : index
    %22 = vector.load %arg8[%c0_17, %c0_18] : memref<1x32xbf16, #tpu.memory_space<vmem>>, vector<1x32xbf16>
    %23 = arith.extf %22 : vector<1x32xbf16> to vector<1x32xf32>
    %24 = vector.broadcast %23 : vector<1x32xf32> to vector<8x32xf32>
    %25 = arith.mulf %21, %24 : vector<8x32xf32>
    %cst_19 = arith.constant dense<0.000000e+00> : vector<8xf32>
    %26 = vector.multi_reduction <add>, %25, %cst_19 [1] : vector<8x32xf32> to vector<8xf32>
    %27 = vector.shape_cast %26 : vector<8xf32> to vector<8x1xf32>
    %c0_20 = arith.constant 0 : index
    %c0_21 = arith.constant 0 : index
    %28 = vector.load %arg9[%c0_20, %c0_21] : memref<1x1xf32, #tpu.memory_space<vmem>>, vector<1x1xf32>
    %29 = vector.broadcast %28 : vector<1x1xf32> to vector<8x1xf32>
    %30 = arith.addf %27, %29 : vector<8x1xf32>
    %c0_22 = arith.constant 0 : index
    %c0_23 = arith.constant 0 : index
    %31 = vector.load %arg10[%c0_22, %c0_23] : memref<8x1xf32, #tpu.memory_space<vmem>>, vector<8x1xf32>
    tpu.vector_store %arg10[%c0_22, %c0_23], %30 {strides = array<i32>} : memref<8x1xf32, #tpu.memory_space<vmem>>, vector<8x1xf32>,
    return
  }
  func.func @transform_0(%arg0: i32) -> (i32, i32) {
    %c0_i32 = arith.constant 0 : i32
    %c0_i32_0 = arith.constant 0 : i32
    return %arg0, %c0_i32 : i32, i32
  }
  func.func @transform_1(%arg0: i32) -> (i32, i32) {
    %c0_i32 = arith.constant 0 : i32
    %c0_i32_0 = arith.constant 0 : i32
    return %arg0, %c0_i32 : i32, i32
  }
  func.func @transform_2(%arg0: i32) -> (i32, i32) {
    %c0_i32 = arith.constant 0 : i32
    %c0_i32_0 = arith.constant 0 : i32
    %c0_i32_1 = arith.constant 0 : i32
    return %c0_i32, %c0_i32_0 : i32, i32
  }
  func.func @transform_3(%arg0: i32) -> (i32, i32) {
    %c0_i32 = arith.constant 0 : i32
    %c0_i32_0 = arith.constant 0 : i32
    %c0_i32_1 = arith.constant 0 : i32
    return %c0_i32, %c0_i32_0 : i32, i32
  }
  func.func @transform_4(%arg0: i32) -> (i32, i32) {
    %c0_i32 = arith.constant 0 : i32
    %c0_i32_0 = arith.constant 0 : i32
    %c0_i32_1 = arith.constant 0 : i32
    return %c0_i32, %c0_i32_0 : i32, i32
  }
  func.func @transform_5(%arg0: i32) -> (i32, i32) {
    %c0_i32 = arith.constant 0 : i32
    %c0_i32_0 = arith.constant 0 : i32
    %c0_i32_1 = arith.constant 0 : i32
    return %c0_i32, %c0_i32_0 : i32, i32
  }
  func.func @transform_6(%arg0: i32) -> (i32, i32) {
    %c0_i32 = arith.constant 0 : i32
    %c0_i32_0 = arith.constant 0 : i32
    %c0_i32_1 = arith.constant 0 : i32
    return %c0_i32, %c0_i32_0 : i32, i32
  }
  func.func @transform_7(%arg0: i32) -> (i32, i32) {
    %c0_i32 = arith.constant 0 : i32
    %c0_i32_0 = arith.constant 0 : i32
    %c0_i32_1 = arith.constant 0 : i32
    return %c0_i32, %c0_i32_0 : i32, i32
  }
  func.func @transform_8(%arg0: i32) -> (i32, i32) {
    %c0_i32 = arith.constant 0 : i32
    %c0_i32_0 = arith.constant 0 : i32
    %c0_i32_1 = arith.constant 0 : i32
    return %c0_i32, %c0_i32_0 : i32, i32
  }
  func.func @transform_9(%arg0: i32) -> (i32, i32) {
    %c0_i32 = arith.constant 0 : i32
    %c0_i32_0 = arith.constant 0 : i32
    return %arg0, %c0_i32 : i32, i32
  }
}

</mosaic_0001>

<llo_original>
// kernel: critic_forward.1
$region0: #{critic_forward.1}
  #allocation0 [shape = 'u32[]', space=smem, size = 0x4, offset = 0x4, fixed_abs, tag = 'smem constant byte address 0x4 - core index']
  #allocation1 [shape = 'u32[144,128]{1,0:T(1,128)}', space=vmem, size = 0x12000, scoped, tag = 'internal scratch']
  #allocation2 [shape = 'f32[1,1]{1,0:T(1,128)S(1)}', space=vmem, size = 0x200, scoped, tag = 'scoped memory for critic_forward.1']
  %s0 = inlined_call_operand.hbm [shape: f32[8,16], index: 0, kind: input, shape index: {}]
  %s1 = inlined_call_operand.hbm [shape: f32[8,8], index: 1, kind: input, shape index: {}]
  %s2 = inlined_call_operand.vmem [shape: bf16[16,32], index: 2, kind: input, shape index: {}]
  %s3 = inlined_call_operand.vmem [shape: bf16[8,32], index: 3, kind: input, shape index: {}]
  %s4 = inlined_call_operand.vmem [shape: f32[1,32], index: 4, kind: input, shape index: {}]
  %s5 = inlined_call_operand.vmem [shape: bf16[32,32], index: 5, kind: input, shape index: {}]
  %s6 = inlined_call_operand.vmem [shape: f32[1,32], index: 6, kind: input, shape index: {}]
  %s7 = inlined_call_operand.vmem [shape: bf16[1,32], index: 7, kind: input, shape index: {}]
  %s8 = inlined_call_operand.<no memory space> [shape: f32[1,1], index: 8, kind: input, shape index: {}]
  %s9 = inlined_call_operand.vmem [shape: f32[8,1], index: 9, kind: output, shape index: {}]
  %s10 = sld [smem:[#allocation0]]
  $region54: #{critic_forward.1} parent=0
    _
  %s12 = ssub.s32 1, %s10
  %s13 = scalar_select 0, %s12, %s10
  %v14 = vstv %s8
  %15 = vst [vmem:[#allocation2] sm:$0x1] %v14
  $region1: #{critic_forward.1} parent=0
    #allocation3 [shape = 'u8[4096]{0}', space=vmem, size = 0x1000, scoped, tag = 'input window, operand 0, single buffered']
    #allocation4 [shape = 's32[1]{0}', space=sflag, size = 0x4, scoped, tag = 'scoped memory for critic_forward.1']
    #allocation5 [shape = 'u8[4096]{0}', space=vmem, size = 0x1000, scoped, tag = 'input window, operand 1, single buffered']
    #allocation6 [shape = 's32[1]{0}', space=sflag, size = 0x4, scoped, tag = 'scoped memory for critic_forward.1']
    %16 = vsyncpa [#allocation4], 0
    %17 = vsyncpa [#allocation6], 0
    // Predicated region
    $region2: #{critic_forward.1} parent=1 // pred_check
      _
    $region3: #{critic_forward.1} parent=1 // pred_check_branch
      %19 = sbr.rel (0) target = $region5
    $region4: #{critic_forward.1} parent=1 // pred_region
      %s21 = ssub.s32 128, 128
      %22 = vsyncadd [#allocation4], %s21
      %s24 = sshll.u32 [#allocation3], 4
      %s25 = int_to_ptr.vmem [resolvable:$true] %s24
      %27 = dma.hbm_to_vmem [thread:$0]  %s0, 128, %s25, [#allocation4]
    $region5: #{critic_forward.1} parent=1 // pred_fallthru
      _
    // Predicated region
    $region6: #{critic_forward.1} parent=1 // pred_check
      _
    $region7: #{critic_forward.1} parent=1 // pred_check_branch
      %29 = sbr.rel (0) target = $region9
    $region8: #{critic_forward.1} parent=1 // pred_region
      %s31 = ssub.s32 128, 128
      %32 = vsyncadd [#allocation6], %s31
      %s34 = sshll.u32 [#allocation5], 4
      %s35 = int_to_ptr.vmem [resolvable:$true] %s34
      %37 = dma.hbm_to_vmem [thread:$0]  %s1, 128, %s35, [#allocation6]
    $region9: #{critic_forward.1} parent=1 // pred_fallthru
      _
    // Predicated region
    $region10: #{critic_forward.1} parent=1 // pred_check
      _
    $region11: #{critic_forward.1} parent=1 // pred_check_branch
      %39 = sbr.rel (0) target = $region13
    $region12: #{critic_forward.1} parent=1 // pred_region
      _
    $region13: #{critic_forward.1} parent=1 // pred_fallthru
      _
    // Predicated region
    $region14: #{critic_forward.1} parent=1 // pred_check
      _
    $region15: #{critic_forward.1} parent=1 // pred_check_branch
      %41 = sbr.rel (0) target = $region17
    $region16: #{critic_forward.1} parent=1 // pred_region
      _
    $region17: #{critic_forward.1} parent=1 // pred_fallthru
      _
    // Predicated region
    $region18: #{critic_forward.1} parent=1 // pred_check
      _
    $region19: #{critic_forward.1} parent=1 // pred_check_branch
      %43 = sbr.rel (0) target = $region21
    $region20: #{critic_forward.1} parent=1 // pred_region
      _
    $region21: #{critic_forward.1} parent=1 // pred_fallthru
      _
    // Predicated region
    $region22: #{critic_forward.1} parent=1 // pred_check
      _
    $region23: #{critic_forward.1} parent=1 // pred_check_branch
      %45 = sbr.rel (0) target = $region25
    $region24: #{critic_forward.1} parent=1 // pred_region
      _
    $region25: #{critic_forward.1} parent=1 // pred_fallthru
      _
    // Predicated region
    $region26: #{critic_forward.1} parent=1 // pred_check
      _
    $region27: #{critic_forward.1} parent=1 // pred_check_branch
      %47 = sbr.rel (0) target = $region29
    $region28: #{critic_forward.1} parent=1 // pred_region
      _
    $region29: #{critic_forward.1} parent=1 // pred_fallthru
      _
    // Predicated region
    $region30: #{critic_forward.1} parent=1 // pred_check
      _
    $region31: #{critic_forward.1} parent=1 // pred_check_branch
      %49 = sbr.rel (0) target = $region33
    $region32: #{critic_forward.1} parent=1 // pred_region
      _
    $region33: #{critic_forward.1} parent=1 // pred_fallthru
      _
    // Predicated region
    $region34: #{critic_forward.1} parent=1 // pred_check
      _
    $region35: #{critic_forward.1} parent=1 // pred_check_branch
      %51 = sbr.rel (0) target = $region37
    $region36: #{critic_forward.1} parent=1 // pred_region
      _
    $region37: #{critic_forward.1} parent=1 // pred_fallthru
      _
    // Predicated region
    $region38: #{critic_forward.1} parent=1 // pred_check
      _
    $region39: #{critic_forward.1} parent=1 // pred_check_branch
      %53 = sbr.rel (0) target = $region41
    $region40: #{critic_forward.1} parent=1 // pred_region
      %54 = dma.done [#allocation4], 128
    $region41: #{critic_forward.1} parent=1 // pred_fallthru
      _
    // Predicated region
    $region42: #{critic_forward.1} parent=1 // pred_check
      _
    $region43: #{critic_forward.1} parent=1 // pred_check_branch
      %56 = sbr.rel (0) target = $region45
    $region44: #{critic_forward.1} parent=1 // pred_region
      %57 = dma.done [#allocation6], 128
    $region45: #{critic_forward.1} parent=1 // pred_fallthru
      _
    %v59 = vld [vmem:[#allocation3] sm:$0xff]
    %v60 = vld [vmem:[#allocation5] sm:$0xff]
    %v61 = vpack.c.bf16 %v59, %v59
    %v62 = vpack.c.bf16 %v60, %v60
    %v63 = vld [vmem:[%s2] sm:$0xf]
    %v64 = vld [vmem:[%s2 + $0x4] sm:$0xf]
    %v65 = vld [vmem:[%s3] sm:$0xf]
    %vm66 = vcmask 64512
    %v68 = vsel %vm66, %v62, 0
    %vm70 = vcmask 1043456
    %v72 = vsel %vm70, %v65, 0
    %74 = vmatprep.subr.bf16.mxu0 0
    %75 = vmatpush1.bf16.msra.mxu0 %v72
    %76 = vmatprep.subr.bf16.mxu0 0
    %77 = vmatpush1.bf16.msra.mxu0 0
    %78 = vmatprep.subr.bf16.mxu0 0
    %79 = vmatpush1.bf16.msra.mxu0 0
    %80 = vmatprep.subr.bf16.mxu0 0
    %81 = vmatpush1.bf16.msra.mxu0 0
    %82 = vmatprep.subr.bf16.mxu0 0
    %83 = vmatpush1.bf16.msra.mxu0 0
    %84 = vmatprep.subr.bf16.mxu0 0
    %85 = vmatpush1.bf16.msra.mxu0 0
    %86 = vmatprep.subr.bf16.mxu0 0
    %87 = vmatpush1.bf16.msra.mxu0 0
    %88 = vmatprep.subr.bf16.mxu0 0
    %89 = vmatpush1.bf16.msra.mxu0 0
    %90 = vmatprep.subr.bf16.mxu0 0
    %91 = vmatpush1.bf16.msra.mxu0 0
    %92 = vmatprep.subr.bf16.mxu0 0
    %93 = vmatpush1.bf16.msra.mxu0 0
    %94 = vmatprep.subr.bf16.mxu0 0
    %95 = vmatpush1.bf16.msra.mxu0 0
    %96 = vmatprep.subr.bf16.mxu0 0
    %97 = vmatpush1.bf16.msra.mxu0 0
    %98 = vmatprep.subr.bf16.mxu0 0
    %99 = vmatpush1.bf16.msra.mxu0 0
    %100 = vmatprep.subr.bf16.mxu0 0
    %101 = vmatpush1.bf16.msra.mxu0 0
    %102 = vmatprep.subr.bf16.mxu0 0
    %103 = vmatpush1.bf16.msra.mxu0 0
    %104 = vmatprep.subr.bf16.mxu0 0
    %105 = vmatpush1.bf16.msra.mxu0 0
    %106 = vmatprep.mubr.bf16.mxu0 0
    %107 = vmatmul.mubr.bf16.gmra.mrb[0].mxu0 %v68
    %v108 = vpop.f32.mrb[0].mxu0
    %v109 = vadd.f32 0.0, %v108
    %v110 = vpop.f32.mrb[0].mxu0
    %v111 = vpop.f32.mrb[0].mxu0
    %v112 = vpop.f32.mrb[0].mxu0
    %113 = vdwg.mxu0
    %v116 = vunpack.c.l.b16 %v63
    %v117 = vunpack.c.l.b16 %v64
    %v118 = vpack.c.b16 %v117, %v116
    %vm120 = vcmask 130048
    %v122 = vsel %vm120, %v61, 0
    %124 = vmatprep.subr.bf16.mxu0 0
    %125 = vmatpush1.bf16.msra.mxu0 %v118
    %126 = vmatprep.subr.bf16.mxu0 0
    %127 = vmatpush1.bf16.msra.mxu0 0
    %128 = vmatprep.subr.bf16.mxu0 0
    %129 = vmatpush1.bf16.msra.mxu0 0
    %130 = vmatprep.subr.bf16.mxu0 0
    %131 = vmatpush1.bf16.msra.mxu0 0
    %132 = vmatprep.subr.bf16.mxu0 0
    %133 = vmatpush1.bf16.msra.mxu0 0
    %134 = vmatprep.subr.bf16.mxu0 0
    %135 = vmatpush1.bf16.msra.mxu0 0
    %136 = vmatprep.subr.bf16.mxu0 0
    %137 = vmatpush1.bf16.msra.mxu0 0
    %138 = vmatprep.subr.bf16.mxu0 0
    %139 = vmatpush1.bf16.msra.mxu0 0
    %140 = vmatprep.subr.bf16.mxu0 0
    %141 = vmatpush1.bf16.msra.mxu0 0
    %142 = vmatprep.subr.bf16.mxu0 0
    %143 = vmatpush1.bf16.msra.mxu0 0
    %144 = vmatprep.subr.bf16.mxu0 0
    %145 = vmatpush1.bf16.msra.mxu0 0
    %146 = vmatprep.subr.bf16.mxu0 0
    %147 = vmatpush1.bf16.msra.mxu0 0
    %148 = vmatprep.subr.bf16.mxu0 0
    %149 = vmatpush1.bf16.msra.mxu0 0
    %150 = vmatprep.subr.bf16.mxu0 0
    %151 = vmatpush1.bf16.msra.mxu0 0
    %152 = vmatprep.subr.bf16.mxu0 0
    %153 = vmatpush1.bf16.msra.mxu0 0
    %154 = vmatprep.subr.bf16.mxu0 0
    %155 = vmatpush1.bf16.msra.mxu0 0
    %156 = vmatprep.mubr.bf16.mxu0 0
    %157 = vmatmul.mubr.bf16.gmra.mrb[0].mxu0 %v122
    %v158 = vpop.f32.mrb[0].mxu0
    %v159 = vadd.f32 %v109, %v158
    %v160 = vpop.f32.mrb[0].mxu0
    %v161 = vpop.f32.mrb[0].mxu0
    %v162 = vpop.f32.mrb[0].mxu0
    %163 = vdwg.mxu0
    %v164 = vld [vmem:[%s4] sm:$0x1]
    %v166 = vlaneseq
    %v167 = vshrl.u32 %v166, 7
    %v168 = vsub.s32 0, %v167
    %v169 = vrot.slane %v164, %v168
    %v171 = vadd.f32 %v159, %v169
    %v172 = vmax.f32 %v171, 0.0
    %v173 = vpack.c.bf16 %v172, %v172
    %v174 = vld [vmem:[%s5] sm:$0xf]
    %v175 = vld [vmem:[%s5 + $0x4] sm:$0xf]
    %v176 = vld [vmem:[%s5 + $0x8] sm:$0xf]
    %v177 = vld [vmem:[%s5 + $0xc] sm:$0xf]
    %v178 = vld [vmem:[%s6] sm:$0x1]
    %v180 = vlaneseq
    %v181 = vshrl.u32 %v180, 7
    %v182 = vsub.s32 0, %v181
    %v183 = vrot.slane %v178, %v182
    %v189 = vunpack.c.l.b16 %v174
    %v190 = vunpack.c.l.b16 %v175
    %v191 = vunpack.c.l.b16 %v176
    %v192 = vunpack.c.l.b16 %v177
    %v193 = vpack.c.b16 %v190, %v189
    %v194 = vpack.c.b16 %v192, %v191
    %vm197 = vcmask 261120
    %v199 = vsel %vm197, %v173, 0
    %201 = vmatprep.subr.bf16.mxu0 0
    %202 = vmatpush1.bf16.msra.mxu0 %v193
    %203 = vmatprep.subr.bf16.mxu0 0
    %204 = vmatpush1.bf16.msra.mxu0 %v194
    %205 = vmatprep.subr.bf16.mxu0 0
    %206 = vmatpush1.bf16.msra.mxu0 0
    %207 = vmatprep.subr.bf16.mxu0 0
    %208 = vmatpush1.bf16.msra.mxu0 0
    %209 = vmatprep.subr.bf16.mxu0 0
    %210 = vmatpush1.bf16.msra.mxu0 0
    %211 = vmatprep.subr.bf16.mxu0 0
    %212 = vmatpush1.bf16.msra.mxu0 0
    %213 = vmatprep.subr.bf16.mxu0 0
    %214 = vmatpush1.bf16.msra.mxu0 0
    %215 = vmatprep.subr.bf16.mxu0 0
    %216 = vmatpush1.bf16.msra.mxu0 0
    %217 = vmatprep.subr.bf16.mxu0 0
    %218 = vmatpush1.bf16.msra.mxu0 0
    %219 = vmatprep.subr.bf16.mxu0 0
    %220 = vmatpush1.bf16.msra.mxu0 0
    %221 = vmatprep.subr.bf16.mxu0 0
    %222 = vmatpush1.bf16.msra.mxu0 0
    %223 = vmatprep.subr.bf16.mxu0 0
    %224 = vmatpush1.bf16.msra.mxu0 0
    %225 = vmatprep.subr.bf16.mxu0 0
    %226 = vmatpush1.bf16.msra.mxu0 0
    %227 = vmatprep.subr.bf16.mxu0 0
    %228 = vmatpush1.bf16.msra.mxu0 0
    %229 = vmatprep.subr.bf16.mxu0 0
    %230 = vmatpush1.bf16.msra.mxu0 0
    %231 = vmatprep.subr.bf16.mxu0 0
    %232 = vmatpush1.bf16.msra.mxu0 0
    %233 = vmatprep.mubr.bf16.mxu0 0
    %234 = vmatmul.mubr.bf16.gmra.mrb[0].mxu0 %v199
    %v235 = vpop.f32.mrb[0].mxu0
    %v236 = vadd.f32 %v183, %v235
    %v237 = vpop.f32.mrb[0].mxu0
    %v238 = vpop.f32.mrb[0].mxu0
    %v239 = vpop.f32.mrb[0].mxu0
    %240 = vdwg.mxu0
    %v241 = vmax.f32 %v236, 0.0
    %v242 = vld [vmem:[%s7] sm:$0x1]
    %v243 = vunpack.c.l.bf16 %v242
    %v244 = vlaneseq
    %v245 = vshrl.u32 %v244, 7
    %v246 = vsub.s32 0, %v245
    %v247 = vrot.slane %v243, %v246
    %v248 = vmul.f32 %v241, %v247
    %v249 = vsel %vm197, %v248, 0.0
    %250 = vadd.xlane.f32.xlu0 %v249
    %v251 = vpop.xlane.xlu0 %250
    %v252 = vld [vmem:[#allocation2] sm:$0x1]
    %v254 = vlaneseq
    %v255 = vshrl.u32 %v254, 7
    %v256 = vsub.s32 0, %v255
    %v257 = vrot.slane %v252, %v256
    %v259 = vadd.f32 %v251, %v257
    %vm260 = vcmask 7168
    %261 = vst.msk [vmem:[%s9] sm:$0xff] %vm260, %v259
    // Predicated region
    $region46: #{critic_forward.1} parent=1 // pred_check
      _
    $region47: #{critic_forward.1} parent=1 // pred_check_branch
      %263 = sbr.rel (0) target = $region49
    $region48: #{critic_forward.1} parent=1 // pred_region
      _
    $region49: #{critic_forward.1} parent=1 // pred_fallthru
      _
    // Predicated region
    $region50: #{critic_forward.1} parent=1 // pred_check
      _
    $region51: #{critic_forward.1} parent=1 // pred_check_branch
      %265 = sbr.rel (0) target = $region53
    $region52: #{critic_forward.1} parent=1 // pred_region
      _
    $region53: #{critic_forward.1} parent=1 // pred_fallthru
      _
    %266 = vsyncpa [#allocation4], 1
    %267 = vsyncpa [#allocation6], 1

</llo_original>
